<compile_context>
chip_gen: v6e
topology: v6e:2x2x1
jax: 0.10.0
libtpu: 0.0.40
codegen_flags: <defaults>
</compile_context>

<pallas_src>
import jax
import jax.numpy as jnp
from jax.experimental import pallas as pl
from jax.experimental.pallas import tpu as pltpu


_LANE = 128
_MIB = 1024 * 1024


def _round_up(v, m):
    return (v + m - 1) // m * m


# ---------------------------------------------------------------------------
# Kernels
# ---------------------------------------------------------------------------
def _gcn_rowslab_kernel(a_ref, x_ref, b_ref, s_ref, o_ref):
    """out[i,j-tile] = (A[i-rows, :] @ x[:, j-tile]) * row_scale + bias.

    The whole contraction (K = n_pad) lives in one A row slab, so there is no
    accumulator scratch, no k axis and no pl.when init/finalize: one long
    contiguous A DMA per row tile feeds a single MXU contraction.
    """
    a = a_ref[...]
    if a.dtype != x_ref.dtype:
        # int8 (or fp8) -> bf16 dequant on the VPU; hidden under the A DMA.
        a = a.astype(x_ref.dtype)
    acc = jnp.dot(a, x_ref[...], preferred_element_type=jnp.float32)
    # Per-row dequant scale (tm,1) and bias row (1,th) broadcast over (tm,th).
    o_ref[...] = (acc * s_ref[...] + b_ref[...]).astype(o_ref.dtype)


def _gcn_ktiled_kernel(a_ref, x_ref, b_ref, s_ref, o_ref, acc_ref):
    """K-tiled variant for graphs whose (tm, n_pad) row slab doesn't fit VMEM."""
    k = pl.program_id(2)

    @pl.when(k == 0)
    def _():
        acc_ref[...] = jnp.zeros_like(acc_ref)

    a = a_ref[...]
    if a.dtype != x_ref.dtype:
        a = a.astype(x_ref.dtype)
    acc_ref[...] += jnp.dot(a, x_ref[...], preferred_element_type=jnp.float32)

    @pl.when(k == pl.num_programs(2) - 1)
    def _():
        o_ref[...] = (acc_ref[...] * s_ref[...] + b_ref[...]).astype(o_ref.dtype)


# ---------------------------------------------------------------------------
# Tiling / dtype / VMEM policy
# ---------------------------------------------------------------------------
def _default_a_dtype(kind):
    """HBM streaming dtype for the adjacency.

    v5e/v6e/v7x are all HBM-bound on the O(N^2) A stream -> store A in 8 bits.
    int8 + per-row scale (upcast to bf16 in-kernel before the MXU dot) is used
    on every supported generation: same byte width as fp8 but far better
    precision, and it never touches the (absent on v7x) integer MXU path.
    Unrecognized chips fall back to plain bf16.
    """
    if any(t in kind for t in ("v5", "v6", "v7")):
        return jnp.int8
    return jnp.bfloat16


def _select_tiling(n_pad, h_pad, a_item, x_item, *, two_cores,
                   slab_budget=6 * _MIB):
    """Pick (mode, tm, tk, th, n_pad)."""
    # Feature tile: keep H untiled while narrow; tile wide feature dims so a
    # large K extent never blows VMEM (review: "guard the feature dimension").
    if h_pad <= 512:
        th = h_pad
    elif h_pad % 256 == 0:
        th = 256
    else:
        th = 128

    # --- row-slab mode: whole contraction in one (tm, n_pad) A tile ---------
    if n_pad * th * x_item <= slab_budget:          # x column slab must fit too
        m = n_pad // _LANE
        cands = [_LANE * d for d in range(min(m, 16), 0, -1)
                 if m % d == 0 and _LANE * d * n_pad * a_item <= slab_budget]
        if cands:
            if two_cores:
                # v7x megacore: prefer an even row-tile count for load balance.
                even = [tm for tm in cands if (n_pad // tm) % 2 == 0]
                if even:
                    return "rowslab", even[0], n_pad, th, n_pad
            return "rowslab", cands[0], n_pad, th, n_pad

    # --- k-tiled mode (very large graphs): ~4-8 MiB A tiles so the ~0.35us ---
    # per-grid-step overhead is amortized over plenty of DMA.
    tm = 512
    tk = 512
    while tk < 4096 and tm * (tk * 2) * a_item <= slab_budget:
        tk *= 2
    n_pad2 = _round_up(n_pad, max(tm, tk))
    return "ktiled", tm, tk, th, n_pad2


def _vmem_limit_bytes(kind, mode, tm, tk, th, n_pad, a_item, x_item, dequant):
    """Compute VMEM need from the chosen tiles; never request all of v7x VMEM."""
    if mode == "rowslab":
        a_buf, x_buf = tm * n_pad * a_item, n_pad * th * x_item
    else:
        a_buf, x_buf = tm * tk * a_item, tk * th * x_item
    need = (2 * a_buf + 2 * x_buf           # double-buffered A and x streams
            + 2 * tm * th * 4               # double-buffered output tiles (f32)
            + tm * th * 4                   # f32 accumulator (k-tiled mode)
            + 2 * (tm + th) * 4)            # row scales + bias row
    if dequant:
        need += (a_buf // a_item) * x_item  # bf16 dequant temp of one A tile
    need = int(need * 1.25) + 4 * _MIB      # compiler-internal headroom
    cap = 48 * _MIB if "v7" in kind else 100 * _MIB   # v7x: 64 MiB physical
    return max(32 * _MIB, min(need, cap))


def _quantize_adjacency(a_f32, a_dtype):
    """A ~= diag(row_scale) @ A_q with A_q stored in `a_dtype`."""
    n = a_f32.shape[0]
    if a_dtype == jnp.int8:
        row_max = jnp.max(jnp.abs(a_f32), axis=1, keepdims=True)
        scale = jnp.where(row_max > 0.0, row_max / 127.0, 1.0).astype(jnp.float32)
        a_q = jnp.clip(jnp.round(a_f32 / scale), -127.0, 127.0).astype(jnp.int8)
        return a_q, scale
    # bf16 / fp8 store values directly; identity row scale.
    return a_f32.astype(a_dtype), jnp.ones((n, 1), jnp.float32)


# ---------------------------------------------------------------------------
# One GCN layer = tiled (A_q @ x) * row_scale + bias
# ---------------------------------------------------------------------------
def _gcn_layer(a_q, a_row_scale, x, bias, *, mode, tm, tk, th, out_dtype,
               vmem_limit_bytes):
    n_pad = a_q.shape[0]
    h_pad = x.shape[1]
    a_item = a_q.dtype.itemsize
    x_item = x.dtype.itemsize
    o_item = jnp.dtype(out_dtype).itemsize

    if mode == "rowslab":
        grid = (n_pad // tm, h_pad // th)
        in_specs = [
            pl.BlockSpec((tm, n_pad), lambda i, j: (i, 0)),   # A row slab
            pl.BlockSpec((n_pad, th), lambda i, j: (0, j)),   # x column slab
            pl.BlockSpec((1, th), lambda i, j: (0, j)),       # bias row
            pl.BlockSpec((tm, 1), lambda i, j: (i, 0)),       # per-row dequant scale
        ]
        out_specs = pl.BlockSpec((tm, th), lambda i, j: (i, j))
        scratch = []
        dims = ("parallel", "parallel")
        kernel = _gcn_rowslab_kernel
        a_bytes = n_pad * n_pad * a_item                       # A streamed once
        x_bytes = (n_pad // tm) * n_pad * h_pad * x_item       # x per row tile
    else:
        grid = (n_pad // tm, h_pad // th, n_pad // tk)
        in_specs = [
            pl.BlockSpec((tm, tk), lambda i, j, k: (i, k)),
            pl.BlockSpec((tk, th), lambda i, j, k: (k, j)),
            pl.BlockSpec((1, th), lambda i, j, k: (0, j)),
            pl.BlockSpec((tm, 1), lambda i, j, k: (i, 0)),
        ]
        out_specs = pl.BlockSpec((tm, th), lambda i, j, k: (i, j))
        scratch = [pltpu.VMEM((tm, th), jnp.float32)]          # f32 accumulator
        dims = ("parallel", "parallel", "arbitrary")
        kernel = _gcn_ktiled_kernel
        a_bytes = (h_pad // th) * n_pad * n_pad * a_item
        x_bytes = (n_pad // tm) * n_pad * h_pad * x_item

    cost = pl.CostEstimate(
        flops=2 * n_pad * n_pad * h_pad,
        bytes_accessed=a_bytes + x_bytes + n_pad * h_pad * o_item,
        transcendentals=0,
    )
    return pl.pallas_call(
        kernel,
        out_shape=jax.ShapeDtypeStruct((n_pad, h_pad), out_dtype),
        grid_spec=pltpu.PrefetchScalarGridSpec(
            num_scalar_prefetch=0,
            grid=grid,
            in_specs=in_specs,
            out_specs=out_specs,
            scratch_shapes=scratch,
        ),
        compiler_params=pltpu.CompilerParams(
            dimension_semantics=dims,
            vmem_limit_bytes=vmem_limit_bytes,
        ),
        cost_estimate=cost,
    )(a_q, x, bias, a_row_scale)


# ---------------------------------------------------------------------------
# GraphEncoder forward
# ---------------------------------------------------------------------------
def graph_encoder(x, edge_index, prior_index, biases, *,
                  compute_dtype=jnp.bfloat16, a_dtype=None):
    """x: (N, H) f32; edge_index/prior_index: (2, E) int32; biases: (L, H) f32."""
    N, H = x.shape
    L = biases.shape[0]

    kind = jax.devices()[0].device_kind.lower()
    two_cores = "v7" in kind
    if a_dtype is None:
        a_dtype = _default_a_dtype(kind)
    a_item = jnp.dtype(a_dtype).itemsize
    x_item = jnp.dtype(compute_dtype).itemsize

    h_pad = _round_up(H, _LANE)
    n_pad0 = _round_up(N, _LANE)
    mode, tm, tk, th, n_pad = _select_tiling(
        n_pad0, h_pad, a_item, x_item, two_cores=two_cores)

    # --- JAX glue: normalized adjacency built once, scattered directly into
    # the padded (n_pad, n_pad) buffer (single scatter + single narrowing cast).
    # Degrees / D^-1/2 are computed here so a tile of A never needs a full-row
    # reduction inside the kernel.  Zero padding is exact.
    edges = jnp.concatenate([edge_index, prior_index], axis=1)
    row, col = edges[0], edges[1]                          # (src, dst)
    ew = jnp.ones((edges.shape[1],), jnp.float32)
    deg = jnp.zeros((N,), jnp.float32).at[col].add(ew)     # scatter_add over col
    dis = jnp.where(deg > 0.0, jax.lax.rsqrt(deg), 0.0)    # deg^-1/2, inf -> 0
    w = dis[row] * ew * dis[col]
    a_f32 = jnp.zeros((n_pad, n_pad), jnp.float32).at[col, row].add(w)
    # TODO(synk): block-sparse path — precompute per row-block the compacted
    # list of nonzero (i, k) A tiles, feed it through
    # PrefetchScalarGridSpec(num_scalar_prefetch>=1) so the A index_map reads
    # tile coordinates from SMEM and all-zero tiles are never DMA'd; HBM
    # traffic then scales with nnz tiles instead of n_pad^2 per layer.
    a_q, a_row_scale = _quantize_adjacency(a_f32, a_dtype)

    x_p = jnp.zeros((n_pad, h_pad), compute_dtype).at[:N, :H].set(
        x.astype(compute_dtype))
    b_p = jnp.zeros((L, h_pad), jnp.float32).at[:, :H].set(
        biases.astype(jnp.float32))

    vmem_limit = _vmem_limit_bytes(kind, mode, tm, tk, th, n_pad, a_item,
                                   x_item, dequant=(a_dtype != compute_dtype))

    act = x_p
    for l in range(L):
        # bf16 between layers (error compounds mildly over L); f32 at the end.
        out_dtype = jnp.float32 if l == L - 1 else compute_dtype
        act = _gcn_layer(a_q, a_row_scale, act, b_p[l:l + 1],
                         mode=mode, tm=tm, tk=tk, th=th,
                         out_dtype=out_dtype, vmem_limit_bytes=vmem_limit)
    return act[:N, :H]


# ---------------------------------------------------------------------------
# Pure-JAX f32 reference mirroring the PyTorch GraphEncoder forward
# ---------------------------------------------------------------------------
def _reference(x, edge_index, prior_index, biases):
    N = x.shape[0]
    edges = jnp.concatenate([edge_index, prior_index], axis=1)
    row, col = edges[0], edges[1]
    ew = jnp.ones((edges.shape[1],), jnp.float32)
    deg = jnp.zeros((N,), jnp.float32).at[col].add(ew)
    dis = jnp.where(deg > 0, deg ** -0.5, 0.0)
    w = dis[row] * ew * dis[col]
    a_norm = jnp.zeros((N, N), jnp.float32).at[col, row].add(w)
    for l in range(biases.shape[0]):
        x = a_norm @ x + biases[l]
    return x


if __name__ == "__main__":
    key = jax.random.PRNGKey(0)
    N, H, L = 32, 32, 2
    E, E_PRIOR = 64, 32

    k1, k2, k3, k4 = jax.random.split(key, 4)
    x = jax.random.normal(k1, (N, H), jnp.float32)
    edge_index = jax.random.randint(k2, (2, E), 0, N, dtype=jnp.int32)
    prior_index = jax.random.randint(k3, (2, E_PRIOR), 0, N, dtype=jnp.int32)
    # GCNConv's bias is zero-initialized in the module; small non-zero values
    # are used here so the in-kernel bias add is actually exercised.
    biases = 0.1 * jax.random.normal(k4, (L, H), jnp.float32)

    out = graph_encoder(x, edge_index, prior_index, biases)
    jax.block_until_ready(out)

    ref = _reference(x, edge_index, prior_index, biases)
    # A is streamed as int8 with a per-row scale (~0.4% relative, same order as
    # bf16) and activations are bf16, so compare at a matching tolerance.
    assert jnp.allclose(out, ref, atol=5e-2, rtol=5e-2), (
        f"mismatch vs reference: max abs err "
        f"{float(jnp.max(jnp.abs(out - ref))):.4e}")

    print("KERNEL_OK")
</pallas_src>

<mosaic_0001>
module attributes {stable_mosaic.version = 11 : i64} {
  func.func @_gcn_rowslab_kernel(%arg0: i32, %arg1: i32, %arg2: memref<128x128xbf16, #tpu.memory_space<vmem>>, %arg3: memref<128x128xbf16, #tpu.memory_space<vmem>>, %arg4: memref<1x128xf32, #tpu.memory_space<vmem>>, %arg5: memref<128x1xf32, #tpu.memory_space<vmem>>, %arg6: memref<128x128xbf16, #tpu.memory_space<vmem>>) attributes {dimension_semantics = [#tpu.dimension_semantics<parallel>, #tpu.dimension_semantics<parallel>], iteration_bounds = array<i64: 1, 1>, scalar_prefetch = 0 : i64, scratch_operands = 0 : i64, tpu.core_type = #tpu.core_type<tc>, window_params = [{transform_indices = @transform_0, window_bounds = array<i64: 128, 128>}, {transform_indices = @transform_1, window_bounds = array<i64: 128, 128>}, {transform_indices = @transform_2, window_bounds = array<i64: 1, 128>}, {transform_indices = @transform_3, window_bounds = array<i64: 128, 1>}, {transform_indices = @transform_4, window_bounds = array<i64: 128, 128>}]} {
    %c0 = arith.constant 0 : index
    %c0_0 = arith.constant 0 : index
    %0 = vector.load %arg2[%c0, %c0_0] : memref<128x128xbf16, #tpu.memory_space<vmem>>, vector<128x128xbf16>
    %c0_1 = arith.constant 0 : index
    %c0_2 = arith.constant 0 : index
    %1 = vector.load %arg3[%c0_1, %c0_2] : memref<128x128xbf16, #tpu.memory_space<vmem>>, vector<128x128xbf16>
    %cst = arith.constant dense<0.000000e+00> : vector<128x128xf32>
    %2 = tpu.matmul %0, %1, %cst {dimension_numbers = #tpu.dot_dimension_numbers<[1], [0], [0], [1], [0, 0, 1, 1], [], []>} : vector<128x128xbf16>, vector<128x128xbf16>, vector<128x128xf32> -> vector<128x128xf32>
    %c0_3 = arith.constant 0 : index
    %c0_4 = arith.constant 0 : index
    %3 = vector.load %arg5[%c0_3, %c0_4] : memref<128x1xf32, #tpu.memory_space<vmem>>, vector<128x1xf32>
    %4 = vector.broadcast %3 : vector<128x1xf32> to vector<128x128xf32>
    %5 = arith.mulf %2, %4 : vector<128x128xf32>
    %c0_5 = arith.constant 0 : index
    %c0_6 = arith.constant 0 : index
    %6 = vector.load %arg4[%c0_5, %c0_6] : memref<1x128xf32, #tpu.memory_space<vmem>>, vector<1x128xf32>
    %7 = vector.broadcast %6 : vector<1x128xf32> to vector<128x128xf32>
    %8 = arith.addf %5, %7 : vector<128x128xf32>
    %9 = arith.truncf %8 : vector<128x128xf32> to vector<128x128xbf16>
    %c0_7 = arith.constant 0 : index
    %c0_8 = arith.constant 0 : index
    %10 = vector.load %arg6[%c0_7, %c0_8] : memref<128x128xbf16, #tpu.memory_space<vmem>>, vector<128x128xbf16>
    tpu.vector_store %arg6[%c0_7, %c0_8], %9 {strides = array<i32>} : memref<128x128xbf16, #tpu.memory_space<vmem>>, vector<128x128xbf16>,
    return
  }
  func.func @transform_0(%arg0: i32, %arg1: i32) -> (i32, i32) {
    %c0_i32 = arith.constant 0 : i32
    %c0_i32_0 = arith.constant 0 : i32
    return %arg0, %c0_i32 : i32, i32
  }
  func.func @transform_1(%arg0: i32, %arg1: i32) -> (i32, i32) {
    %c0_i32 = arith.constant 0 : i32
    %c0_i32_0 = arith.constant 0 : i32
    return %c0_i32, %arg1 : i32, i32
  }
  func.func @transform_2(%arg0: i32, %arg1: i32) -> (i32, i32) {
    %c0_i32 = arith.constant 0 : i32
    %c0_i32_0 = arith.constant 0 : i32
    return %c0_i32, %arg1 : i32, i32
  }
  func.func @transform_3(%arg0: i32, %arg1: i32) -> (i32, i32) {
    %c0_i32 = arith.constant 0 : i32
    %c0_i32_0 = arith.constant 0 : i32
    return %arg0, %c0_i32 : i32, i32
  }
  func.func @transform_4(%arg0: i32, %arg1: i32) -> (i32, i32) {
    %c0_i32 = arith.constant 0 : i32
    return %arg0, %arg1 : i32, i32
  }
}

</mosaic_0001>

<llo_original>
// kernel: tpu_custom_call.1
$region0: #{tpu_custom_call.1}
  #allocation0 [shape = 'u32[]', space=smem, size = 0x4, offset = 0x4, fixed_abs, tag = 'smem constant byte address 0x4 - core index']
  #allocation1 [shape = 'u32[144,128]{1,0:T(1,128)}', space=vmem, size = 0x12000, scoped, tag = 'internal scratch']
  %s0 = inlined_call_operand.vmem [shape: bf16[128,128], index: 0, kind: input, shape index: {}]
  %s1 = inlined_call_operand.vmem [shape: bf16[128,128], index: 1, kind: input, shape index: {}]
  %s2 = inlined_call_operand.vmem [shape: f32[1,128], index: 2, kind: input, shape index: {}]
  %s3 = inlined_call_operand.vmem [shape: f32[128,1], index: 3, kind: input, shape index: {}]
  %s4 = inlined_call_operand.hbm [shape: bf16[128,128], index: 4, kind: output, shape index: {}]
  %s5 = sld [smem:[#allocation0]]
  $region26: #{tpu_custom_call.1} parent=0
    _
  %s7 = ssub.s32 1, %s5
  %s8 = scalar_select 0, %s7, %s5
  $region1: #{tpu_custom_call.1} parent=0
    #allocation2 [shape = 'u8[32768]{0}', space=vmem, size = 0x8000, scoped, tag = 'output window, operand 0, single buffered']
    #allocation3 [shape = 's32[1]{0}', space=sflag, size = 0x4, scoped, tag = 'scoped memory for tpu_custom_call.1']
    %9 = vsyncpa [#allocation3], 0
    // Predicated region
    $region2: #{tpu_custom_call.1} parent=1 // pred_check
      _
    $region3: #{tpu_custom_call.1} parent=1 // pred_check_branch
      %11 = sbr.rel (0) target = $region5
    $region4: #{tpu_custom_call.1} parent=1 // pred_region
      _
    $region5: #{tpu_custom_call.1} parent=1 // pred_fallthru
      _
    // Predicated region
    $region6: #{tpu_custom_call.1} parent=1 // pred_check
      _
    $region7: #{tpu_custom_call.1} parent=1 // pred_check_branch
      %13 = sbr.rel (0) target = $region9
    $region8: #{tpu_custom_call.1} parent=1 // pred_region
      _
    $region9: #{tpu_custom_call.1} parent=1 // pred_fallthru
      _
    // Predicated region
    $region10: #{tpu_custom_call.1} parent=1 // pred_check
      _
    $region11: #{tpu_custom_call.1} parent=1 // pred_check_branch
      %15 = sbr.rel (0) target = $region13
    $region12: #{tpu_custom_call.1} parent=1 // pred_region
      _
    $region13: #{tpu_custom_call.1} parent=1 // pred_fallthru
      _
    // Predicated region
    $region14: #{tpu_custom_call.1} parent=1 // pred_check
      _
    $region15: #{tpu_custom_call.1} parent=1 // pred_check_branch
      %17 = sbr.rel (0) target = $region17
    $region16: #{tpu_custom_call.1} parent=1 // pred_region
      _
    $region17: #{tpu_custom_call.1} parent=1 // pred_fallthru
      _
    %v19 = vld [vmem:[%s0] sm:$0xf]
    %v20 = vld [vmem:[%s0 + $0x4] sm:$0xf]
    %v21 = vld [vmem:[%s0 + $0x8] sm:$0xf]
    %v22 = vld [vmem:[%s0 + $0xc] sm:$0xf]
    %v23 = vld [vmem:[%s0 + $0x10] sm:$0xf]
    %v24 = vld [vmem:[%s0 + $0x14] sm:$0xf]
    %v25 = vld [vmem:[%s0 + $0x18] sm:$0xf]
    %v26 = vld [vmem:[%s0 + $0x1c] sm:$0xf]
    %v27 = vld [vmem:[%s0 + $0x20] sm:$0xf]
    %v28 = vld [vmem:[%s0 + $0x24] sm:$0xf]
    %v29 = vld [vmem:[%s0 + $0x28] sm:$0xf]
    %v30 = vld [vmem:[%s0 + $0x2c] sm:$0xf]
    %v31 = vld [vmem:[%s0 + $0x30] sm:$0xf]
    %v32 = vld [vmem:[%s0 + $0x34] sm:$0xf]
    %v33 = vld [vmem:[%s0 + $0x38] sm:$0xf]
    %v34 = vld [vmem:[%s0 + $0x3c] sm:$0xf]
    %v35 = vld [vmem:[%s1] sm:$0xf]
    %v36 = vld [vmem:[%s1 + $0x4] sm:$0xf]
    %v37 = vld [vmem:[%s1 + $0x8] sm:$0xf]
    %v38 = vld [vmem:[%s1 + $0xc] sm:$0xf]
    %v39 = vld [vmem:[%s1 + $0x10] sm:$0xf]
    %v40 = vld [vmem:[%s1 + $0x14] sm:$0xf]
    %v41 = vld [vmem:[%s1 + $0x18] sm:$0xf]
    %v42 = vld [vmem:[%s1 + $0x1c] sm:$0xf]
    %v43 = vld [vmem:[%s1 + $0x20] sm:$0xf]
    %v44 = vld [vmem:[%s1 + $0x24] sm:$0xf]
    %v45 = vld [vmem:[%s1 + $0x28] sm:$0xf]
    %v46 = vld [vmem:[%s1 + $0x2c] sm:$0xf]
    %v47 = vld [vmem:[%s1 + $0x30] sm:$0xf]
    %v48 = vld [vmem:[%s1 + $0x34] sm:$0xf]
    %v49 = vld [vmem:[%s1 + $0x38] sm:$0xf]
    %v50 = vld [vmem:[%s1 + $0x3c] sm:$0xf]
    %v67 = vunpack.c.l.b16 %v19
    %v68 = vunpack.c.l.b16 %v20
    %v69 = vunpack.c.l.b16 %v21
    %v70 = vunpack.c.l.b16 %v22
    %v71 = vunpack.c.l.b16 %v23
    %v72 = vunpack.c.l.b16 %v24
    %v73 = vunpack.c.l.b16 %v25
    %v74 = vunpack.c.l.b16 %v26
    %v75 = vunpack.c.l.b16 %v27
    %v76 = vunpack.c.l.b16 %v28
    %v77 = vunpack.c.l.b16 %v29
    %v78 = vunpack.c.l.b16 %v30
    %v79 = vunpack.c.l.b16 %v31
    %v80 = vunpack.c.l.b16 %v32
    %v81 = vunpack.c.l.b16 %v33
    %v82 = vunpack.c.l.b16 %v34
    %v83 = vpack.c.b16 %v68, %v67
    %v84 = vpack.c.b16 %v70, %v69
    %v85 = vpack.c.b16 %v72, %v71
    %v86 = vpack.c.b16 %v74, %v73
    %v87 = vpack.c.b16 %v76, %v75
    %v88 = vpack.c.b16 %v78, %v77
    %v89 = vpack.c.b16 %v80, %v79
    %v90 = vpack.c.b16 %v82, %v81
    %v115 = vunpack.c.l.b16 %v35
    %v116 = vunpack.c.l.b16 %v36
    %v117 = vunpack.c.l.b16 %v37
    %v118 = vunpack.c.l.b16 %v38
    %v119 = vunpack.c.l.b16 %v39
    %v120 = vunpack.c.l.b16 %v40
    %v121 = vunpack.c.l.b16 %v41
    %v122 = vunpack.c.l.b16 %v42
    %v123 = vunpack.c.l.b16 %v43
    %v124 = vunpack.c.l.b16 %v44
    %v125 = vunpack.c.l.b16 %v45
    %v126 = vunpack.c.l.b16 %v46
    %v127 = vunpack.c.l.b16 %v47
    %v128 = vunpack.c.l.b16 %v48
    %v129 = vunpack.c.l.b16 %v49
    %v130 = vunpack.c.l.b16 %v50
    %v131 = vpack.c.b16 %v116, %v115
    %v132 = vpack.c.b16 %v118, %v117
    %v133 = vpack.c.b16 %v120, %v119
    %v134 = vpack.c.b16 %v122, %v121
    %v135 = vpack.c.b16 %v124, %v123
    %v136 = vpack.c.b16 %v126, %v125
    %v137 = vpack.c.b16 %v128, %v127
    %v138 = vpack.c.b16 %v130, %v129
    %147 = vmatprep.subr.bf16.mxu0 0
    %148 = vmatpush1.bf16.msra.mxu0 %v138
    %149 = vmatprep.subr.bf16.mxu0 0
    %150 = vmatpush1.bf16.msra.mxu0 %v137
    %151 = vmatprep.subr.bf16.mxu0 0
    %152 = vmatpush1.bf16.msra.mxu0 %v136
    %153 = vmatprep.subr.bf16.mxu0 0
    %154 = vmatpush1.bf16.msra.mxu0 %v135
    %155 = vmatprep.subr.bf16.mxu0 0
    %156 = vmatpush1.bf16.msra.mxu0 %v134
    %157 = vmatprep.subr.bf16.mxu0 0
    %158 = vmatpush1.bf16.msra.mxu0 %v133
    %159 = vmatprep.subr.bf16.mxu0 0
    %160 = vmatpush1.bf16.msra.mxu0 %v132
    %161 = vmatprep.subr.bf16.mxu0 0
    %162 = vmatpush1.bf16.msra.mxu0 %v131
    %163 = vmatprep.subr.bf16.mxu0 0
    %164 = vmatpush2.bf16.msra.mxu0 0
    %165 = vmatprep.subr.bf16.mxu0 0
    %166 = vmatpush2.bf16.msra.mxu0 0
    %167 = vmatprep.subr.bf16.mxu0 0
    %168 = vmatpush2.bf16.msra.mxu0 0
    %169 = vmatprep.subr.bf16.mxu0 0
    %170 = vmatpush2.bf16.msra.mxu0 0
    %171 = vmatprep.subr.bf16.mxu0 0
    %172 = vmatpush2.bf16.msra.mxu0 0
    %173 = vmatprep.subr.bf16.mxu0 0
    %174 = vmatpush2.bf16.msra.mxu0 0
    %175 = vmatprep.subr.bf16.mxu0 0
    %176 = vmatpush2.bf16.msra.mxu0 0
    %177 = vmatprep.subr.bf16.mxu0 0
    %178 = vmatpush2.bf16.msra.mxu0 0
    %179 = vmatprep.mubr.bf16.mxu0 0
    %180 = vmatmul.mubr.bf16.gmra.mxu0 %v83
    %v181 = vpop.f32.mrf.mxu0
    %v182 = vadd.f32 0.0, %v181
    %v183 = vpop.f32.mrf.mxu0
    %v184 = vpop.f32.mrf.mxu0
    %v185 = vadd.f32 0.0, %v184
    %v186 = vpop.f32.mrf.mxu0
    %187 = vmatprep.mubr.bf16.mxu0 0
    %188 = vmatmul.mubr.bf16.gmra.mxu0 %v84
    %v189 = vpop.f32.mrf.mxu0
    %v190 = vadd.f32 0.0, %v189
    %v191 = vpop.f32.mrf.mxu0
    %v192 = vpop.f32.mrf.mxu0
    %v193 = vadd.f32 0.0, %v192
    %v194 = vpop.f32.mrf.mxu0
    %195 = vmatprep.mubr.bf16.mxu0 0
    %196 = vmatmul.mubr.bf16.gmra.mxu0 %v85
    %v197 = vpop.f32.mrf.mxu0
    %v198 = vadd.f32 0.0, %v197
    %v199 = vpop.f32.mrf.mxu0
    %v200 = vpop.f32.mrf.mxu0
    %v201 = vadd.f32 0.0, %v200
    %v202 = vpop.f32.mrf.mxu0
    %203 = vmatprep.mubr.bf16.mxu0 0
    %204 = vmatmul.mubr.bf16.gmra.mxu0 %v86
    %v205 = vpop.f32.mrf.mxu0
    %v206 = vadd.f32 0.0, %v205
    %v207 = vpop.f32.mrf.mxu0
    %v208 = vpop.f32.mrf.mxu0
    %v209 = vadd.f32 0.0, %v208
    %v210 = vpop.f32.mrf.mxu0
    %211 = vmatprep.mubr.bf16.mxu0 0
    %212 = vmatmul.mubr.bf16.gmra.mxu0 %v87
    %v213 = vpop.f32.mrf.mxu0
    %v214 = vadd.f32 0.0, %v213
    %v215 = vpop.f32.mrf.mxu0
    %v216 = vpop.f32.mrf.mxu0
    %v217 = vadd.f32 0.0, %v216
    %v218 = vpop.f32.mrf.mxu0
    %219 = vmatprep.mubr.bf16.mxu0 0
    %220 = vmatmul.mubr.bf16.gmra.mxu0 %v88
    %v221 = vpop.f32.mrf.mxu0
    %v222 = vadd.f32 0.0, %v221
    %v223 = vpop.f32.mrf.mxu0
    %v224 = vpop.f32.mrf.mxu0
    %v225 = vadd.f32 0.0, %v224
    %v226 = vpop.f32.mrf.mxu0
    %227 = vmatprep.mubr.bf16.mxu0 0
    %228 = vmatmul.mubr.bf16.gmra.mxu0 %v89
    %v229 = vpop.f32.mrf.mxu0
    %v230 = vadd.f32 0.0, %v229
    %v231 = vpop.f32.mrf.mxu0
    %v232 = vpop.f32.mrf.mxu0
    %v233 = vadd.f32 0.0, %v232
    %v234 = vpop.f32.mrf.mxu0
    %235 = vmatprep.mubr.bf16.mxu0 0
    %236 = vmatmul.mubr.bf16.gmra.mxu0 %v90
    %v237 = vpop.f32.mrf.mxu0
    %v238 = vadd.f32 0.0, %v237
    %v239 = vpop.f32.mrf.mxu0
    %v240 = vpop.f32.mrf.mxu0
    %v241 = vadd.f32 0.0, %v240
    %v242 = vpop.f32.mrf.mxu0
    %243 = vdwg.mxu0
    %v244 = vld [vmem:[%s3] sm:$0xff]
    %v245 = vld [vmem:[%s3 + $0x8] sm:$0xff]
    %v246 = vld [vmem:[%s3 + $0x10] sm:$0xff]
    %v247 = vld [vmem:[%s3 + $0x18] sm:$0xff]
    %v248 = vld [vmem:[%s3 + $0x20] sm:$0xff]
    %v249 = vld [vmem:[%s3 + $0x28] sm:$0xff]
    %v250 = vld [vmem:[%s3 + $0x30] sm:$0xff]
    %v251 = vld [vmem:[%s3 + $0x38] sm:$0xff]
    %v252 = vld [vmem:[%s3 + $0x40] sm:$0xff]
    %v253 = vld [vmem:[%s3 + $0x48] sm:$0xff]
    %v254 = vld [vmem:[%s3 + $0x50] sm:$0xff]
    %v255 = vld [vmem:[%s3 + $0x58] sm:$0xff]
    %v256 = vld [vmem:[%s3 + $0x60] sm:$0xff]
    %v257 = vld [vmem:[%s3 + $0x68] sm:$0xff]
    %v258 = vld [vmem:[%s3 + $0x70] sm:$0xff]
    %v259 = vld [vmem:[%s3 + $0x78] sm:$0xff]
    %261 = vset.pattern.permute.xlu0 0
    %262 = vperm.xlu0 %261, %v244
    %v263 = vpop.permute.xlu0 %262
    %266 = vset.pattern.permute.xlu0 0
    %267 = vperm.xlu0 %266, %v245
    %v268 = vpop.permute.xlu0 %267
    %271 = vset.pattern.permute.xlu0 0
    %272 = vperm.xlu0 %271, %v246
    %v273 = vpop.permute.xlu0 %272
    %276 = vset.pattern.permute.xlu0 0
    %277 = vperm.xlu0 %276, %v247
    %v278 = vpop.permute.xlu0 %277
    %281 = vset.pattern.permute.xlu0 0
    %282 = vperm.xlu0 %281, %v248
    %v283 = vpop.permute.xlu0 %282
    %286 = vset.pattern.permute.xlu0 0
    %287 = vperm.xlu0 %286, %v249
    %v288 = vpop.permute.xlu0 %287
    %291 = vset.pattern.permute.xlu0 0
    %292 = vperm.xlu0 %291, %v250
    %v293 = vpop.permute.xlu0 %292
    %296 = vset.pattern.permute.xlu0 0
    %297 = vperm.xlu0 %296, %v251
    %v298 = vpop.permute.xlu0 %297
    %301 = vset.pattern.permute.xlu0 0
    %302 = vperm.xlu0 %301, %v252
    %v303 = vpop.permute.xlu0 %302
    %306 = vset.pattern.permute.xlu0 0
    %307 = vperm.xlu0 %306, %v253
    %v308 = vpop.permute.xlu0 %307
    %311 = vset.pattern.permute.xlu0 0
    %312 = vperm.xlu0 %311, %v254
    %v313 = vpop.permute.xlu0 %312
    %316 = vset.pattern.permute.xlu0 0
    %317 = vperm.xlu0 %316, %v255
    %v318 = vpop.permute.xlu0 %317
    %321 = vset.pattern.permute.xlu0 0
    %322 = vperm.xlu0 %321, %v256
    %v323 = vpop.permute.xlu0 %322
    %326 = vset.pattern.permute.xlu0 0
    %327 = vperm.xlu0 %326, %v257
    %v328 = vpop.permute.xlu0 %327
    %331 = vset.pattern.permute.xlu0 0
    %332 = vperm.xlu0 %331, %v258
    %v333 = vpop.permute.xlu0 %332
    %336 = vset.pattern.permute.xlu0 0
    %337 = vperm.xlu0 %336, %v259
    %v338 = vpop.permute.xlu0 %337
    %v340 = vmul.f32 %v182, %v263
    %v341 = vmul.f32 %v185, %v268
    %v342 = vmul.f32 %v190, %v273
    %v343 = vmul.f32 %v193, %v278
    %v344 = vmul.f32 %v198, %v283
    %v345 = vmul.f32 %v201, %v288
    %v346 = vmul.f32 %v206, %v293
    %v347 = vmul.f32 %v209, %v298
    %v348 = vmul.f32 %v214, %v303
    %v349 = vmul.f32 %v217, %v308
    %v350 = vmul.f32 %v222, %v313
    %v351 = vmul.f32 %v225, %v318
    %v352 = vmul.f32 %v230, %v323
    %v353 = vmul.f32 %v233, %v328
    %v354 = vmul.f32 %v238, %v333
    %v355 = vmul.f32 %v241, %v338
    %v356 = vld [vmem:[%s2] sm:$0x1]
    %v358 = vlaneseq
    %v359 = vshrl.u32 %v358, 7
    %v360 = vsub.s32 0, %v359
    %v361 = vrot.slane %v356, %v360
    %v363 = vadd.f32 %v340, %v361
    %v364 = vadd.f32 %v341, %v361
    %v365 = vadd.f32 %v342, %v361
    %v366 = vadd.f32 %v343, %v361
    %v367 = vadd.f32 %v344, %v361
    %v368 = vadd.f32 %v345, %v361
    %v369 = vadd.f32 %v346, %v361
    %v370 = vadd.f32 %v347, %v361
    %v371 = vadd.f32 %v348, %v361
    %v372 = vadd.f32 %v349, %v361
    %v373 = vadd.f32 %v350, %v361
    %v374 = vadd.f32 %v351, %v361
    %v375 = vadd.f32 %v352, %v361
    %v376 = vadd.f32 %v353, %v361
    %v377 = vadd.f32 %v354, %v361
    %v378 = vadd.f32 %v355, %v361
    %v379 = vpack.c.bf16 %v364, %v363
    %v380 = vpack.c.bf16 %v366, %v365
    %v381 = vpack.c.bf16 %v368, %v367
    %v382 = vpack.c.bf16 %v370, %v369
    %v383 = vpack.c.bf16 %v372, %v371
    %v384 = vpack.c.bf16 %v374, %v373
    %v385 = vpack.c.bf16 %v376, %v375
    %v386 = vpack.c.bf16 %v378, %v377
    %v395 = vunpack.c.l.b16 %v379
    %v396 = vunpack.c.h.b16 %v379
    %v397 = vunpack.c.l.b16 %v380
    %v398 = vunpack.c.h.b16 %v380
    %v399 = vunpack.c.l.b16 %v381
    %v400 = vunpack.c.h.b16 %v381
    %v401 = vunpack.c.l.b16 %v382
    %v402 = vunpack.c.h.b16 %v382
    %v403 = vunpack.c.l.b16 %v383
    %v404 = vunpack.c.h.b16 %v383
    %v405 = vunpack.c.l.b16 %v384
    %v406 = vunpack.c.h.b16 %v384
    %v407 = vunpack.c.l.b16 %v385
    %v408 = vunpack.c.h.b16 %v385
    %v409 = vunpack.c.l.b16 %v386
    %v410 = vunpack.c.h.b16 %v386
    %v411 = vpack.c.b16 %v395, %v395
    %v412 = vpack.c.b16 %v396, %v396
    %v413 = vpack.c.b16 %v397, %v397
    %v414 = vpack.c.b16 %v398, %v398
    %v415 = vpack.c.b16 %v399, %v399
    %v416 = vpack.c.b16 %v400, %v400
    %v417 = vpack.c.b16 %v401, %v401
    %v418 = vpack.c.b16 %v402, %v402
    %v419 = vpack.c.b16 %v403, %v403
    %v420 = vpack.c.b16 %v404, %v404
    %v421 = vpack.c.b16 %v405, %v405
    %v422 = vpack.c.b16 %v406, %v406
    %v423 = vpack.c.b16 %v407, %v407
    %v424 = vpack.c.b16 %v408, %v408
    %v425 = vpack.c.b16 %v409, %v409
    %v426 = vpack.c.b16 %v410, %v410
    %443 = vst [vmem:[#allocation2] sm:$0xf] %v411
    %444 = vst [vmem:[#allocation2 + $0x4] sm:$0xf] %v412
    %445 = vst [vmem:[#allocation2 + $0x8] sm:$0xf] %v413
    %446 = vst [vmem:[#allocation2 + $0xc] sm:$0xf] %v414
    %447 = vst [vmem:[#allocation2 + $0x10] sm:$0xf] %v415
    %448 = vst [vmem:[#allocation2 + $0x14] sm:$0xf] %v416
    %449 = vst [vmem:[#allocation2 + $0x18] sm:$0xf] %v417
    %450 = vst [vmem:[#allocation2 + $0x1c] sm:$0xf] %v418
    %451 = vst [vmem:[#allocation2 + $0x20] sm:$0xf] %v419
    %452 = vst [vmem:[#allocation2 + $0x24] sm:$0xf] %v420
    %453 = vst [vmem:[#allocation2 + $0x28] sm:$0xf] %v421
    %454 = vst [vmem:[#allocation2 + $0x2c] sm:$0xf] %v422
    %455 = vst [vmem:[#allocation2 + $0x30] sm:$0xf] %v423
    %456 = vst [vmem:[#allocation2 + $0x34] sm:$0xf] %v424
    %457 = vst [vmem:[#allocation2 + $0x38] sm:$0xf] %v425
    %458 = vst [vmem:[#allocation2 + $0x3c] sm:$0xf] %v426
    // Predicated region
    $region18: #{tpu_custom_call.1} parent=1 // pred_check
      _
    $region19: #{tpu_custom_call.1} parent=1 // pred_check_branch
      %460 = sbr.rel (0) target = $region21
    $region20: #{tpu_custom_call.1} parent=1 // pred_region
      %s462 = ssub.s32 1024, 1024
      %463 = vsyncadd [#allocation3], %s462
      %s464 = sshll.u32 [#allocation2], 4
      %s465 = int_to_ptr.vmem [resolvable:$true] %s464
      %470 = dma.vmem_to_hbm [thread:$0]  %s465, 1024, %s4, [#allocation3], 64, 64, 4
    $region21: #{tpu_custom_call.1} parent=1 // pred_fallthru
      _
    // Predicated region
    $region22: #{tpu_custom_call.1} parent=1 // pred_check
      _
    $region23: #{tpu_custom_call.1} parent=1 // pred_check_branch
      %472 = sbr.rel (0) target = $region25
    $region24: #{tpu_custom_call.1} parent=1 // pred_region
      %473 = dma.done [#allocation3], 1024
    $region25: #{tpu_custom_call.1} parent=1 // pred_fallthru
      _
    %474 = vsyncpa [#allocation3], 1

</llo_original>
